<compile_context>
chip_gen: v7x
topology: tpu7x:2x2x1
jax: 0.10.0
libtpu: 0.0.40
codegen_flags: <defaults>
</compile_context>

<pallas_src>
import functools
import math

import jax
import jax.numpy as jnp
from jax.experimental import pallas as pl
from jax.experimental.pallas import tpu as pltpu


def _eca_kernel(w_ref, x_ref, o_ref, *, ksize, pad, inv_hw):
    # w_ref: (ksize,) f32 conv taps in SMEM.
    # x_ref / o_ref: (bt, C, HW) activation block in its native dtype.
    x = x_ref[...]                                   # native dtype, no f32 copy
    C = x.shape[1]

    # 1) AdaptiveAvgPool2d(1): lane reduction, f32 accumulation.
    pooled = jnp.sum(x, axis=2, keepdims=True, dtype=jnp.float32) * inv_hw  # (bt, C, 1)

    # 2) Conv1d(1, 1, ksize, padding=(ksize-1)//2, bias=False) along channels,
    #    as ksize shifted FMAs: XLU sublane rolls + zero-pad edge masks.
    ch = jax.lax.broadcasted_iota(jnp.int32, pooled.shape, 1)   # channel index
    conv = w_ref[pad] * pooled                                  # centre tap (shift 0)
    for j in range(ksize):
        s = j - pad
        if s == 0:
            continue
        # rolled[b, c, 0] = pooled[b, (c + s) % C, 0]
        rolled = pltpu.roll(pooled, (-s) % C, axis=1)
        valid = jnp.logical_and(ch + s >= 0, ch + s < C)        # zero padding at edges
        conv = conv + w_ref[j] * jnp.where(valid, rolled, jnp.float32(0.0))

    # 3) sigmoid gate (EUP), 4) rescale: broadcast (bt, C, 1) over the lane axis.
    # Gate is cast to x.dtype before the multiply (avoids an f32 copy of the
    # tile); for sub-f32 activations this rounds slightly differently from
    # "multiply in f32 then cast" — well within attention-gate tolerance.
    gate = jax.nn.sigmoid(conv).astype(x.dtype)
    o_ref[...] = x * gate


def _choose_batch_tile(n, per_item_bytes, target_bytes=8 << 20):
    """Largest divisor of n whose block fits ~target_bytes.

    Prefers an even grid-step count (v7x megacore balance) only when it costs
    less than halving the block size, so v5e/v6e don't pay doubled per-step
    overhead for parallelism they don't have.
    """
    divisors = [d for d in range(1, n + 1) if n % d == 0]
    fits = [d for d in divisors if d * per_item_bytes <= target_bytes] or [1]
    best = max(fits)
    even = [d for d in fits if (n // d) % 2 == 0 and 2 * d >= best]
    return max(even) if even else best


def eca_block_pallas(x, w, *, donate=False):
    """x: (N, C, H, W); w: (1, ksize) Conv1d weight (out_ch=in_ch=1 squeezed).

    Set donate=True only when the buffer feeding `x` is actually donated at the
    jit boundary; otherwise aliasing triggers a hidden defensive copy.
    """
    N, C, H, W = x.shape
    HW = H * W
    ksize = w.shape[-1]
    pad = (ksize - 1) // 2

    xf = x.reshape(N, C, HW)                          # no lane padding, no slice

    itemsize = jnp.dtype(x.dtype).itemsize
    per_item = C * HW * itemsize
    bt = _choose_batch_tile(N, per_item)
    block_bytes = bt * per_item

    # VMEM budget: input + output blocks, each double-buffered, plus headroom
    # for the small pooled/conv temporaries.  (~40 MiB at the 8 MiB target, so
    # it fits v7x's 64 MiB physical VMEM and lifts v5e/v6e scoped defaults.)
    vmem_limit = int(min(128 << 20, max(32 << 20, 4 * block_bytes + (8 << 20))))

    w_flat = w.reshape(-1).astype(jnp.float32)        # (ksize,) scalars -> SMEM

    call_kwargs = {}
    if donate:
        # Same-shape elementwise rescale: alias activation input to the output.
        call_kwargs["input_output_aliases"] = {1: 0}

    out = pl.pallas_call(
        functools.partial(_eca_kernel, ksize=ksize, pad=pad, inv_hw=1.0 / HW),
        out_shape=jax.ShapeDtypeStruct((N, C, HW), x.dtype),
        grid=(N // bt,),
        in_specs=[
            pl.BlockSpec(memory_space=pltpu.MemorySpace.SMEM),   # conv taps (scalar path)
            pl.BlockSpec((bt, C, HW), lambda n: (n, 0, 0)),      # activation block
        ],
        out_specs=pl.BlockSpec((bt, C, HW), lambda n: (n, 0, 0)),
        compiler_params=pltpu.CompilerParams(
            dimension_semantics=("parallel",),
            vmem_limit_bytes=vmem_limit),
        **call_kwargs,
    )(w_flat, xf)

    return out.reshape(N, C, H, W)


def eca_block_reference(x, w):
    """Pure-JAX reference matching the PyTorch forward."""
    N, C, H, W = x.shape
    ksize = w.shape[-1]
    pad = (ksize - 1) // 2
    wf = w.reshape(-1)
    y = jnp.mean(x, axis=(2, 3))                                 # (N, C)
    yp = jnp.pad(y, ((0, 0), (pad, pad)))
    conv = sum(wf[j] * yp[:, j:j + C] for j in range(ksize))     # (N, C)
    gate = jax.nn.sigmoid(conv)[:, :, None, None]
    return x * gate


def eca_kernel_size(channel, b=1, gamma=2):
    k = int(abs((math.log(channel, 2) + b) / gamma))
    return k if k % 2 else k + 1


if __name__ == "__main__":
    key = jax.random.PRNGKey(0)
    kx, kw = jax.random.split(key)

    N, C, H, W = 2, 32, 16, 16
    ksize = eca_kernel_size(C)          # C=32 -> kernel_size=3

    x = jax.random.normal(kx, (N, C, H, W), dtype=jnp.float32)
    # Deterministic conv1d weight init (uniform, a la PyTorch default scale).
    bound = 1.0 / math.sqrt(ksize)
    w = jax.random.uniform(kw, (1, ksize), dtype=jnp.float32,
                           minval=-bound, maxval=bound)

    out = jax.jit(eca_block_pallas)(x, w)
    jax.block_until_ready(out)

    ref = eca_block_reference(x, w)
    assert jnp.allclose(out, ref, rtol=1e-5, atol=1e-5), "mismatch vs reference"

    print("KERNEL_OK")
</pallas_src>

<mosaic_0001>
module attributes {stable_mosaic.version = 11 : i64} {
  func.func @_eca_kernel(%arg0: i32, %arg1: memref<3xf32, #tpu.memory_space<smem>>, %arg2: memref<1x32x256xf32, #tpu.memory_space<vmem>>, %arg3: memref<1x32x256xf32, #tpu.memory_space<vmem>>) attributes {dimension_semantics = [#tpu.dimension_semantics<parallel>], iteration_bounds = array<i64: 2>, scalar_prefetch = 0 : i64, scratch_operands = 0 : i64, tpu.core_type = #tpu.core_type<tc>, window_params = [{transform_indices = @transform_0, window_bounds = array<i64: 3>}, {transform_indices = @transform_1, window_bounds = array<i64: 1, 32, 256>}, {transform_indices = @transform_2, window_bounds = array<i64: 1, 32, 256>}]} {
    %c0 = arith.constant 0 : index
    %c0_0 = arith.constant 0 : index
    %c0_1 = arith.constant 0 : index
    %0 = vector.load %arg2[%c0, %c0_0, %c0_1] : memref<1x32x256xf32, #tpu.memory_space<vmem>>, vector<1x32x256xf32>
    %cst = arith.constant dense<0.000000e+00> : vector<1x32xf32>
    %1 = vector.multi_reduction <add>, %0, %cst [2] : vector<1x32x256xf32> to vector<1x32xf32>
    %2 = vector.shape_cast %1 : vector<1x32xf32> to vector<1x32x1xf32>
    %cst_2 = arith.constant 3.906250e-03 : f32
    %3 = vector.broadcast %cst_2 : f32 to vector<1x32x1xf32>
    %4 = arith.mulf %2, %3 : vector<1x32x1xf32>
    %5 = tpu.iota {dimensions = array<i32: 1>} : vector<1x32x1xi32>
    %c1 = arith.constant 1 : index
    %6 = memref.load %arg1[%c1] : memref<3xf32, #tpu.memory_space<smem>>
    %7 = vector.broadcast %6 : f32 to vector<1x32x1xf32>
    %8 = arith.mulf %7, %4 : vector<1x32x1xf32>
    %c1_i32 = arith.constant 1 : i32
    %9 = tpu.dynamic_rotate %4 by %c1_i32 dim 1 : vector<1x32x1xf32>, i32 -> vector<1x32x1xf32>
    %c-1_i32 = arith.constant -1 : i32
    %10 = vector.broadcast %c-1_i32 : i32 to vector<1x32x1xi32>
    %11 = arith.addi %5, %10 : vector<1x32x1xi32>
    %c0_i32 = arith.constant 0 : i32
    %12 = vector.broadcast %c0_i32 : i32 to vector<1x32x1xi32>
    %13 = arith.cmpi sge, %11, %12 : vector<1x32x1xi32>
    %c-1_i32_3 = arith.constant -1 : i32
    %14 = vector.broadcast %c-1_i32_3 : i32 to vector<1x32x1xi32>
    %15 = arith.addi %5, %14 : vector<1x32x1xi32>
    %c32_i32 = arith.constant 32 : i32
    %16 = vector.broadcast %c32_i32 : i32 to vector<1x32x1xi32>
    %17 = arith.cmpi slt, %15, %16 : vector<1x32x1xi32>
    %18 = arith.andi %13, %17 : vector<1x32x1xi1>
    %c0_4 = arith.constant 0 : index
    %19 = memref.load %arg1[%c0_4] : memref<3xf32, #tpu.memory_space<smem>>
    %cst_5 = arith.constant 0.000000e+00 : f32
    %20 = vector.broadcast %cst_5 : f32 to vector<1x32x1xf32>
    %21 = arith.select %18, %9, %20 : vector<1x32x1xi1>, vector<1x32x1xf32>
    %22 = vector.broadcast %19 : f32 to vector<1x32x1xf32>
    %23 = arith.mulf %22, %21 : vector<1x32x1xf32>
    %24 = arith.addf %8, %23 : vector<1x32x1xf32>
    %c31_i32 = arith.constant 31 : i32
    %25 = tpu.dynamic_rotate %4 by %c31_i32 dim 1 : vector<1x32x1xf32>, i32 -> vector<1x32x1xf32>
    %c1_i32_6 = arith.constant 1 : i32
    %26 = vector.broadcast %c1_i32_6 : i32 to vector<1x32x1xi32>
    %27 = arith.addi %5, %26 : vector<1x32x1xi32>
    %c0_i32_7 = arith.constant 0 : i32
    %28 = vector.broadcast %c0_i32_7 : i32 to vector<1x32x1xi32>
    %29 = arith.cmpi sge, %27, %28 : vector<1x32x1xi32>
    %c1_i32_8 = arith.constant 1 : i32
    %30 = vector.broadcast %c1_i32_8 : i32 to vector<1x32x1xi32>
    %31 = arith.addi %5, %30 : vector<1x32x1xi32>
    %c32_i32_9 = arith.constant 32 : i32
    %32 = vector.broadcast %c32_i32_9 : i32 to vector<1x32x1xi32>
    %33 = arith.cmpi slt, %31, %32 : vector<1x32x1xi32>
    %34 = arith.andi %29, %33 : vector<1x32x1xi1>
    %c2 = arith.constant 2 : index
    %35 = memref.load %arg1[%c2] : memref<3xf32, #tpu.memory_space<smem>>
    %cst_10 = arith.constant 0.000000e+00 : f32
    %36 = vector.broadcast %cst_10 : f32 to vector<1x32x1xf32>
    %37 = arith.select %34, %25, %36 : vector<1x32x1xi1>, vector<1x32x1xf32>
    %38 = vector.broadcast %35 : f32 to vector<1x32x1xf32>
    %39 = arith.mulf %38, %37 : vector<1x32x1xf32>
    %40 = arith.addf %24, %39 : vector<1x32x1xf32>
    %41 = arith.negf %40 : vector<1x32x1xf32>
    %42 = math.exp %41 : vector<1x32x1xf32>
    %cst_11 = arith.constant 1.000000e+00 : f32
    %43 = vector.broadcast %cst_11 : f32 to vector<1x32x1xf32>
    %44 = arith.addf %43, %42 : vector<1x32x1xf32>
    %45 = arith.divf %43, %44 : vector<1x32x1xf32>
    %46 = vector.broadcast %45 : vector<1x32x1xf32> to vector<1x32x256xf32>
    %47 = arith.mulf %0, %46 : vector<1x32x256xf32>
    %c0_12 = arith.constant 0 : index
    %c0_13 = arith.constant 0 : index
    %c0_14 = arith.constant 0 : index
    %48 = vector.load %arg3[%c0_12, %c0_13, %c0_14] : memref<1x32x256xf32, #tpu.memory_space<vmem>>, vector<1x32x256xf32>
    tpu.vector_store %arg3[%c0_12, %c0_13, %c0_14], %47 {strides = array<i32>} : memref<1x32x256xf32, #tpu.memory_space<vmem>>, vector<1x32x256xf32>,
    return
  }
  func.func @transform_0(%arg0: i32) -> i32 {
    %c0_i32 = arith.constant 0 : i32
    %c0_i32_0 = arith.constant 0 : i32
    return %c0_i32 : i32
  }
  func.func @transform_1(%arg0: i32) -> (i32, i32, i32) {
    %c0_i32 = arith.constant 0 : i32
    %c0_i32_0 = arith.constant 0 : i32
    %c0_i32_1 = arith.constant 0 : i32
    return %arg0, %c0_i32, %c0_i32_0 : i32, i32, i32
  }
  func.func @transform_2(%arg0: i32) -> (i32, i32, i32) {
    %c0_i32 = arith.constant 0 : i32
    %c0_i32_0 = arith.constant 0 : i32
    %c0_i32_1 = arith.constant 0 : i32
    return %arg0, %c0_i32, %c0_i32_0 : i32, i32, i32
  }
}

</mosaic_0001>

<llo_original>
// kernel: eca_block_pallas.1
$region0: #{eca_block_pallas.1}
  #allocation0 [shape = 'u32[]', space=smem, size = 0x4, offset = 0x4, fixed_abs, tag = 'smem constant byte address 0x4 - core index']
  #allocation1 [shape = 'u32[144,128]{1,0:T(1,128)}', space=vmem, size = 0x12000, scoped, tag = 'internal scratch']
  %s0 = inlined_call_operand.vmem [shape: f32[3], index: 0, kind: input, shape index: {}]
  %s1 = inlined_call_operand.vmem [shape: f32[2,32,256], index: 1, kind: input, shape index: {}]
  %s2 = inlined_call_operand.vmem [shape: f32[2,32,256], index: 2, kind: output, shape index: {}]
  %s3 = sld [smem:[#allocation0]]
  $region45: #{eca_block_pallas.1} parent=0
    _
  %s5 = ssub.s32 1, %s3
  %s6 = scalar_select 0, %s5, %s3
  $region1: #{eca_block_pallas.1} parent=0
    #allocation2 [shape = 'u8[512]{0}', space=smem, size = 0x200, scoped, tag = 'input window, operand 0, single buffered']
    #allocation3 [shape = 's32[2]{0}', space=sflag, size = 0x8, scoped, tag = 'scoped memory for eca_block_pallas.1']
    %7 = vsyncpa [#allocation3], 0
    loop: start=0, step=1, limit=4
    $region2: #{eca_block_pallas.1} parent=1 // loop_pre_header
      _
    $region3: #{eca_block_pallas.1} parent=1 // loop_header
      %s9 = sphi 0, %s13
      %p10 = scmp.ge.s32.totalorder %s9, 4
      %s17 = sphi 0, %s17
      %s19 = sphi 0, %s17
      %s20 = sphi 0, %s19
      %s34 = sphi 0, %s20
      %s40 = sphi 0, %s42
      %s43 = sphi 0, %s40
      %s44 = sphi 0, %s43
      %s60 = sphi 0, %s44
      %s66 = sphi 0, %s68
      %s69 = sphi 0, %s66
      %s70 = sphi 0, %s69
      %s86 = sphi 0, %s70
    $region4: #{eca_block_pallas.1} parent=1 // loop_header_branch
      %12 = sbr.rel (%p10) target = $region8
    $region5: #{eca_block_pallas.1} parent=1 // loop_body
      %s14 = ssub.s32 %s9, 1
      %s15 = ssub.s32 %s9, 2
      %s16 = sadd.s32 %s9, 1
      %s18 = sadd.s32 %s17, 1
      %p21 = scmp.eq.s32.totalorder %s9, 1
      %p22 = scmp.ne.s32.totalorder %s17, %s19
      %p23 = scmp.eq.s32.totalorder %s9, 0
      %p24 = por %p22, %p23
      %p25 = scmp.ne.s32.totalorder %s17, %s19
      %p26 = scmp.eq.s32.totalorder %s14, 1
      %p27 = por %p25, %p26
      %p28 = scmp.ne.s32.totalorder %s19, %s20
      %p29 = scmp.eq.s32.totalorder %s14, 0
      %p30 = por %p28, %p29
      %p31 = scmp.ne.s32.totalorder %s19, %s20
      %p32 = scmp.eq.s32.totalorder %s15, 1
      %p33 = por %p31, %p32
      %p35 = scmp.ne.s32.totalorder %s20, %s34
      %p36 = scmp.eq.s32.totalorder %s15, 0
      %p37 = por %p35, %p36
      %s38 = ssub.s32 %s9, %s16
      %p39 = scmp.eq.s32.totalorder %s38, 0
      %s41 = sadd.s32 %s40, 1
      %s42 = scalar_select %p39, %s40, %s41
      %p45 = pneg %p39
      %p46 = scmp.eq.s32.totalorder %s9, 1
      %p47 = por %p45, %p46
      %p48 = scmp.ne.s32.totalorder %s40, %s43
      %p49 = scmp.eq.s32.totalorder %s9, 0
      %p50 = por %p48, %p49
      %p51 = scmp.ne.s32.totalorder %s40, %s43
      %p52 = scmp.eq.s32.totalorder %s14, 1
      %p53 = por %p51, %p52
      %p54 = scmp.ne.s32.totalorder %s43, %s44
      %p55 = scmp.eq.s32.totalorder %s14, 0
      %p56 = por %p54, %p55
      %p57 = scmp.ne.s32.totalorder %s43, %s44
      %p58 = scmp.eq.s32.totalorder %s15, 1
      %p59 = por %p57, %p58
      %p61 = scmp.ne.s32.totalorder %s44, %s60
      %p62 = scmp.eq.s32.totalorder %s15, 0
      %p63 = por %p61, %p62
      %s64 = ssub.s32 %s9, %s16
      %p65 = scmp.eq.s32.totalorder %s64, 0
      %s67 = sadd.s32 %s66, 1
      %s68 = scalar_select %p65, %s66, %s67
      %p71 = pneg %p65
      %p72 = scmp.eq.s32.totalorder %s9, 1
      %p73 = por %p71, %p72
      %p74 = scmp.ne.s32.totalorder %s66, %s69
      %p75 = scmp.eq.s32.totalorder %s9, 0
      %p76 = por %p74, %p75
      %p77 = scmp.ne.s32.totalorder %s66, %s69
      %p78 = scmp.eq.s32.totalorder %s14, 1
      %p79 = por %p77, %p78
      %p80 = scmp.ne.s32.totalorder %s69, %s70
      %p81 = scmp.eq.s32.totalorder %s14, 0
      %p82 = por %p80, %p81
      %p83 = scmp.ne.s32.totalorder %s69, %s70
      %p84 = scmp.eq.s32.totalorder %s15, 1
      %p85 = por %p83, %p84
      %p87 = scmp.ne.s32.totalorder %s70, %s86
      %p88 = scmp.eq.s32.totalorder %s15, 0
      %p89 = por %p87, %p88
      %p90 = scmp.le.s32.totalorder 1, %s9
      %p91 = scmp.lt.s32.totalorder %s9, 3
      %p92 = pnand %p90, %p91
      %p93 = pneg %p92
      // Predicated region
      $region9: #{eca_block_pallas.1} parent=5 // pred_check
        _
      $region10: #{eca_block_pallas.1} parent=5 // pred_check_branch
        %95 = sbr.rel (%p92) target = $region12
      $region11: #{eca_block_pallas.1} parent=5 // pred_region
        %s96 = ssub.s32 %s9, 1
        // Predicated region
        $region13: #{eca_block_pallas.1} parent=11 // pred_check
          %p97 = pneg %p30
        $region14: #{eca_block_pallas.1} parent=11 // pred_check_branch
          %99 = sbr.rel (%p97) target = $region16
        $region15: #{eca_block_pallas.1} parent=11 // pred_region
          %s101 = ssub.s32 16, 16
          %102 = vsyncadd [#allocation3], %s101
          %s104 = sshll.u32 %s0, 4
          %s105 = int_to_ptr.vmem [resolvable:$true] %s104
          %107 = dma.vmem_to_smem %s105, 16, [#allocation2], [#allocation3]
        $region16: #{eca_block_pallas.1} parent=11 // pred_fallthru
          _
      $region12: #{eca_block_pallas.1} parent=5 // pred_fallthru
        _
      %p108 = scmp.lt.s32.totalorder %s9, 2
      // Predicated region
      $region17: #{eca_block_pallas.1} parent=5 // pred_check
        %p109 = pneg %p108
      $region18: #{eca_block_pallas.1} parent=5 // pred_check_branch
        %111 = sbr.rel (%p109) target = $region20
      $region19: #{eca_block_pallas.1} parent=5 // pred_region
        // Predicated region
        $region21: #{eca_block_pallas.1} parent=19 // pred_check
          %p112 = pneg %p50
        $region22: #{eca_block_pallas.1} parent=19 // pred_check_branch
          %114 = sbr.rel (%p112) target = $region24
        $region23: #{eca_block_pallas.1} parent=19 // pred_region
          %p115 = scmp.lt.s32.totalorder %s9, 1
          %s116 = scalar_select %p115, %s9, 1
          %s117 = smul.addr %s116, 8
          %s118 = smul.addr %s117, 8
          %s119 = scalar_lea.vmem %s1, %s118
        $region24: #{eca_block_pallas.1} parent=19 // pred_fallthru
          _
      $region20: #{eca_block_pallas.1} parent=5 // pred_fallthru
        _
      %p120 = scmp.le.s32.totalorder 1, %s9
      %p121 = scmp.lt.s32.totalorder %s9, 3
      %p122 = pnand %p120, %p121
      %p123 = pneg %p122
      // Predicated region
      $region25: #{eca_block_pallas.1} parent=5 // pred_check
        _
      $region26: #{eca_block_pallas.1} parent=5 // pred_check_branch
        %125 = sbr.rel (%p122) target = $region28
      $region27: #{eca_block_pallas.1} parent=5 // pred_region
        %s126 = ssub.s32 %s9, 1
        // Predicated region
        $region29: #{eca_block_pallas.1} parent=27 // pred_check
          %p127 = pneg %p30
        $region30: #{eca_block_pallas.1} parent=27 // pred_check_branch
          %129 = sbr.rel (%p127) target = $region32
        $region31: #{eca_block_pallas.1} parent=27 // pred_region
          %130 = dma.done [#allocation3], 16
        $region32: #{eca_block_pallas.1} parent=27 // pred_fallthru
          _
        %131 = sfence
        %p132 = pneg %p30
        %p133 = pneg %p27
        %p134 = scmp.lt.s32.totalorder %s14, 1
        %s135 = scalar_select %p134, %s14, 1
        %s136 = smul.addr %s135, 8
        %s137 = smul.addr %s136, 8
        %s138 = scalar_lea.vmem %s1, %s137
        %p139 = pneg %p56
        %p140 = pneg %p53
        %p141 = pneg %p82
        %p142 = pneg %p79
        %p143 = scmp.lt.s32.totalorder %s14, 1
        %s144 = scalar_select %p143, %s14, 1
        %s145 = smul.addr %s144, 8
        %s146 = smul.addr %s145, 8
        %s147 = scalar_lea.vmem %s2, %s146
        %p148 = scmp.lt.s32.totalorder %s14, 1
        %s149 = scalar_select %p148, %s14, 1
        %s150 = smul.addr %s149, 8
        %s151 = smul.addr %s150, 8
        %s152 = scalar_lea.vmem %s1, %s151
        %p153 = scmp.lt.s32.totalorder %s14, 1
        %s154 = scalar_select %p153, %s14, 1
        %s155 = smul.addr %s154, 8
        %s156 = smul.addr %s155, 8
        %s157 = scalar_lea.vmem %s2, %s156
        %v158 = vld [vmem:[%s152] sm:$0xff]
        %v159 = vld [vmem:[%s152 + $0x8] sm:$0xff]
        %v160 = vld [vmem:[%s152 + $0x10] sm:$0xff]
        %v161 = vld [vmem:[%s152 + $0x18] sm:$0xff]
        %v162 = vld [vmem:[%s152 + $0x20] sm:$0xff]
        %v163 = vld [vmem:[%s152 + $0x28] sm:$0xff]
        %v164 = vld [vmem:[%s152 + $0x30] sm:$0xff]
        %v165 = vld [vmem:[%s152 + $0x38] sm:$0xff]
        %v166 = vadd.f32 %v158, %v159
        %167 = vadd.xlane.f32.xlu0 %v166
        %v168 = vpop.xlane.xlu0 %167
        %v169 = vadd.f32 %v160, %v161
        %170 = vadd.xlane.f32.xlu0 %v169
        %v171 = vpop.xlane.xlu0 %170
        %v172 = vadd.f32 %v162, %v163
        %173 = vadd.xlane.f32.xlu0 %v172
        %v174 = vpop.xlane.xlu0 %173
        %v175 = vadd.f32 %v164, %v165
        %176 = vadd.xlane.f32.xlu0 %v175
        %v177 = vpop.xlane.xlu0 %176
        %v178 = vmul.f32 %v168, 0.00390625
        %v179 = vmul.f32 %v171, 0.00390625
        %v180 = vmul.f32 %v174, 0.00390625
        %v181 = vmul.f32 %v177, 0.00390625
        %v182 = vlaneseq
        %v183 = vshrl.u32 %v182, 7
        %v184 = vadd.s32 %v183, 8
        %v185 = vadd.s32 %v183, 16
        %v186 = vadd.s32 %v183, 24
        %s187 = sld [smem:[#allocation2 + $0x1]]
        %v188 = vstv %s187
        %v189 = vmul.f32 %v188, %v178
        %v190 = vmul.f32 %v188, %v179
        %v191 = vmul.f32 %v188, %v180
        %v192 = vmul.f32 %v188, %v181
        %v193 = vrot.slane %v178, 7
        %v194 = vrot.slane %v179, 7
        %v195 = vrot.slane %v180, 7
        %v196 = vrot.slane %v181, 7
        %vm197 = vcmp.lt.s32.totalorder %v183, 1
        %v198 = vsel %vm197, %v195, %v196
        %v199 = vsel %vm197, %v194, %v195
        %v200 = vsel %vm197, %v193, %v194
        %v201 = vsel %vm197, %v196, %v193
        %v202 = vadd.s32 %v183, 4294967295
        %v203 = vadd.s32 %v184, 4294967295
        %v204 = vadd.s32 %v185, 4294967295
        %v205 = vadd.s32 %v186, 4294967295
        %vm206 = vcmp.ge.s32.totalorder %v202, 0
        %vm207 = vcmp.ge.s32.totalorder %v203, 0
        %vm208 = vcmp.ge.s32.totalorder %v204, 0
        %vm209 = vcmp.ge.s32.totalorder %v205, 0
        %vm210 = vcmp.lt.s32.totalorder %v202, 32
        %vm211 = vcmp.lt.s32.totalorder %v203, 32
        %vm212 = vcmp.lt.s32.totalorder %v204, 32
        %vm213 = vcmp.lt.s32.totalorder %v205, 32
        %vm214 = vmand %vm206, %vm210
        %vm215 = vmand %vm207, %vm211
        %vm216 = vmand %vm208, %vm212
        %vm217 = vmand %vm209, %vm213
        %s218 = sld [smem:[#allocation2]]
        %v219 = vsel %vm214, %v201, 0.0
        %v220 = vsel %vm215, %v200, 0.0
        %v221 = vsel %vm216, %v199, 0.0
        %v222 = vsel %vm217, %v198, 0.0
        %v223 = vstv %s218
        %v224 = vmul.f32 %v223, %v219
        %v225 = vmul.f32 %v223, %v220
        %v226 = vmul.f32 %v223, %v221
        %v227 = vmul.f32 %v223, %v222
        %v228 = vadd.f32 %v189, %v224
        %v229 = vadd.f32 %v190, %v225
        %v230 = vadd.f32 %v191, %v226
        %v231 = vadd.f32 %v192, %v227
        %v232 = vrot.slane %v178, 1
        %v233 = vrot.slane %v179, 1
        %v234 = vrot.slane %v180, 1
        %v235 = vrot.slane %v181, 1
        %vm236 = vcmp.lt.s32.totalorder %v183, 7
        %v237 = vsel %vm236, %v234, %v235
        %v238 = vsel %vm236, %v233, %v234
        %v239 = vsel %vm236, %v232, %v233
        %v240 = vsel %vm236, %v235, %v232
        %v241 = vadd.s32 %v183, 1
        %v242 = vadd.s32 %v184, 1
        %v243 = vadd.s32 %v185, 1
        %v244 = vadd.s32 %v186, 1
        %vm245 = vcmp.ge.s32.totalorder %v241, 0
        %vm246 = vcmp.ge.s32.totalorder %v242, 0
        %vm247 = vcmp.ge.s32.totalorder %v243, 0
        %vm248 = vcmp.ge.s32.totalorder %v244, 0
        %vm249 = vcmp.lt.s32.totalorder %v241, 32
        %vm250 = vcmp.lt.s32.totalorder %v242, 32
        %vm251 = vcmp.lt.s32.totalorder %v243, 32
        %vm252 = vcmp.lt.s32.totalorder %v244, 32
        %vm253 = vmand %vm245, %vm249
        %vm254 = vmand %vm246, %vm250
        %vm255 = vmand %vm247, %vm251
        %vm256 = vmand %vm248, %vm252
        %s257 = sld [smem:[#allocation2 + $0x2]]
        %v258 = vsel %vm253, %v239, 0.0
        %v259 = vsel %vm254, %v238, 0.0
        %v260 = vsel %vm255, %v237, 0.0
        %v261 = vsel %vm256, %v240, 0.0
        %v262 = vstv %s257
        %v263 = vmul.f32 %v262, %v258
        %v264 = vmul.f32 %v262, %v259
        %v265 = vmul.f32 %v262, %v260
        %v266 = vmul.f32 %v262, %v261
        %v267 = vadd.f32 %v228, %v263
        %v268 = vadd.f32 %v229, %v264
        %v269 = vadd.f32 %v230, %v265
        %v270 = vadd.f32 %v231, %v266
        %v271 = vxor.u32 %v267, 2147483648
        %v272 = vxor.u32 %v268, 2147483648
        %v273 = vxor.u32 %v269, 2147483648
        %v274 = vxor.u32 %v270, 2147483648
        %v275 = vmul.f32 %v271, 1.442695
        %v276 = vpow.pop %v275
        %v277 = vmul.f32 %v272, 1.442695
        %v278 = vpow.pop %v277
        %v279 = vmul.f32 %v273, 1.442695
        %v280 = vpow.pop %v279
        %v281 = vmul.f32 %v274, 1.442695
        %v282 = vpow.pop %v281
        %v283 = vadd.f32 %v276, 1.0
        %v284 = vadd.f32 %v278, 1.0
        %v285 = vadd.f32 %v280, 1.0
        %v286 = vadd.f32 %v282, 1.0
        %v287 = vrcp.pop %v283
        %v288 = vmul.f32 1.0, %v287
        %v289 = vrcp.pop %v284
        %v290 = vmul.f32 1.0, %v289
        %v291 = vrcp.pop %v285
        %v292 = vmul.f32 1.0, %v291
        %v293 = vrcp.pop %v286
        %v294 = vmul.f32 1.0, %v293
        %296 = vset.pattern.permute.xlu0 0
        %297 = vperm.xlu0 %296, %v288
        %v298 = vpop.permute.xlu0 %297
        %301 = vset.pattern.permute.xlu0 0
        %302 = vperm.xlu0 %301, %v290
        %v303 = vpop.permute.xlu0 %302
        %306 = vset.pattern.permute.xlu0 0
        %307 = vperm.xlu0 %306, %v292
        %v308 = vpop.permute.xlu0 %307
        %311 = vset.pattern.permute.xlu0 0
        %312 = vperm.xlu0 %311, %v294
        %v313 = vpop.permute.xlu0 %312
        %v315 = vmul.f32 %v158, %v298
        %v316 = vmul.f32 %v159, %v298
        %v317 = vmul.f32 %v160, %v303
        %v318 = vmul.f32 %v161, %v303
        %v319 = vmul.f32 %v162, %v308
        %v320 = vmul.f32 %v163, %v308
        %v321 = vmul.f32 %v164, %v313
        %v322 = vmul.f32 %v165, %v313
        %323 = vst [vmem:[%s157] sm:$0xff] %v315
        %324 = vst [vmem:[%s157 + $0x8] sm:$0xff] %v316
        %325 = vst [vmem:[%s157 + $0x10] sm:$0xff] %v317
        %326 = vst [vmem:[%s157 + $0x18] sm:$0xff] %v318
        %327 = vst [vmem:[%s157 + $0x20] sm:$0xff] %v319
        %328 = vst [vmem:[%s157 + $0x28] sm:$0xff] %v320
        %329 = vst [vmem:[%s157 + $0x30] sm:$0xff] %v321
        %330 = vst [vmem:[%s157 + $0x38] sm:$0xff] %v322
        %p331 = scmp.lt.s32.totalorder %s14, 1
        %s332 = scalar_select %p331, %s14, 1
        %s333 = smul.addr %s332, 8
        %s334 = smul.addr %s333, 8
        %s335 = scalar_lea.vmem %s2, %s334
        // Predicated region
        $region33: #{eca_block_pallas.1} parent=27 // pred_check
          %p336 = pneg %p79
        $region34: #{eca_block_pallas.1} parent=27 // pred_check_branch
          %338 = sbr.rel (%p336) target = $region36
        $region35: #{eca_block_pallas.1} parent=27 // pred_region
          _
        $region36: #{eca_block_pallas.1} parent=27 // pred_fallthru
          _
      $region28: #{eca_block_pallas.1} parent=5 // pred_fallthru
        _
      %p339 = scmp.le.s32.totalorder 2, %s9
      // Predicated region
      $region37: #{eca_block_pallas.1} parent=5 // pred_check
        %p340 = pneg %p339
      $region38: #{eca_block_pallas.1} parent=5 // pred_check_branch
        %342 = sbr.rel (%p340) target = $region40
      $region39: #{eca_block_pallas.1} parent=5 // pred_region
        %s343 = ssub.s32 %s9, 2
        // Predicated region
        $region41: #{eca_block_pallas.1} parent=39 // pred_check
          %p344 = pneg %p85
        $region42: #{eca_block_pallas.1} parent=39 // pred_check_branch
          %346 = sbr.rel (%p344) target = $region44
        $region43: #{eca_block_pallas.1} parent=39 // pred_region
          %p347 = scmp.lt.s32.totalorder %s15, 1
          %s348 = scalar_select %p347, %s15, 1
          %s349 = smul.addr %s348, 8
          %s350 = smul.addr %s349, 8
          %s351 = scalar_lea.vmem %s2, %s350
        $region44: #{eca_block_pallas.1} parent=39 // pred_fallthru
          _
      $region40: #{eca_block_pallas.1} parent=5 // pred_fallthru
        _
    $region6: #{eca_block_pallas.1} parent=1 // loop_footer
      %s13 = sadd.s32 1, %s9
    $region7: #{eca_block_pallas.1} parent=1 // loop_footer_branch
      %8 = sbr.rel target = $region3
    $region8: #{eca_block_pallas.1} parent=1 // loop_exit
      _
    %352 = vsyncpa [#allocation3], 1
    %s353 = scalar_lea.sflag [#allocation3], 1
    %354 = vsyncpa %s353, 1

</llo_original>
